<compile_context>
chip_gen: v7x
topology: tpu7x:2x2x1
jax: 0.10.0
libtpu: 0.0.40
codegen_flags: <defaults>
</compile_context>

<pallas_src>
import jax
import jax.numpy as jnp
from jax.experimental import pallas as pl
from jax.experimental.pallas import tpu as pltpu


# ----------------------------- kernel bodies ------------------------------

def _cut_both_kernel(x_ref, o_ref):
    # x_ref: (TB, H, W), o_ref: (TB, H-2, W-2) ; copy the interior window.
    Ho = o_ref.shape[1]
    Wo = o_ref.shape[2]
    o_ref[...] = x_ref[:, 1:1 + Ho, 1:1 + Wo]


def _cut_end_slice_kernel(x_ref, o_ref):
    # x_ref: (TB, H, W), o_ref: (TB, H-1, W-1) ; offset-0 (aligned) slices.
    Ho = o_ref.shape[1]
    Wo = o_ref.shape[2]
    o_ref[...] = x_ref[:, :Ho, :Wo]


def _copy_kernel(x_ref, o_ref):
    # Fast path: input block is already the cropped window.
    o_ref[...] = x_ref[...]


# ------------------------------- utilities --------------------------------

def _round_up(a, b):
    return ((a + b - 1) // b) * b


def _largest_divisor_leq(m, cap):
    """Largest divisor of m that is <= cap (>= 1)."""
    cap = max(1, min(cap, m))
    best = 1
    d = 1
    while d * d <= m:
        if m % d == 0:
            q = m // d
            if d <= cap and d > best:
                best = d
            if q <= cap and q > best:
                best = q
        d += 1
    return best


def _vmem_capacity_bytes():
    try:
        return int(pltpu.get_tpu_info().vmem_capacity_bytes)
    except Exception:
        # Conservative fallback: v7x per-TensorCore VMEM.
        return 64 * 1024 * 1024


# --------------------------------- wrapper ---------------------------------

def cut_pallas(x, cut='both'):
    """Pallas equivalent of Cut(cut).forward(x) for NCHW input `x`."""
    N, C, H, W = x.shape
    if cut == 'both':
        Ho, Wo = H - 2, W - 2
    elif cut == 'end':
        Ho, Wo = H - 1, W - 1
    else:
        # Kept as AttributeError to mirror the original PyTorch module.
        raise AttributeError(f'Unkown cut keyword {cut}')

    if Ho <= 0 or Wo <= 0:
        raise ValueError(
            f'Cut(cut={cut!r}) needs H, W large enough; got H={H}, W={W}')

    M = N * C
    xf = x.reshape(M, H, W)  # contiguous -> free

    # ---- padded (tile-layout-aware) per-image VMEM footprint ----
    itemsize = jnp.dtype(x.dtype).itemsize
    sub = max(8, 32 // itemsize)          # sublane multiple: 8 f32 / 16 bf16 / 32 i8
    pad_in = _round_up(H, sub) * _round_up(W, 128) * itemsize
    pad_out = _round_up(Ho, sub) * _round_up(Wo, 128) * itemsize

    # 'end' fast path: DMA only the cropped window when it is tile-aligned.
    end_aligned = (cut == 'end') and (Ho % sub == 0) and (Wo % 128 == 0)
    in_bytes = pad_out if end_aligned else pad_in
    per_image = in_bytes + pad_out

    # ---- generation-aware VMEM budget for one step's (in + out), x2 buffered
    vmem_cap = _vmem_capacity_bytes()
    budget = min(16 * 1024 * 1024, vmem_cap // 4)
    max_tb = max(1, budget // (2 * per_image))

    # ---- choose grid step count: even (v7x 2 TCs), each step >= ~1 MiB padded
    total_padded = M * per_image
    steps_by_size = max(1, total_padded // (1 << 20))
    target_steps = int(min(8, steps_by_size))
    if target_steps >= 2 and target_steps % 2 == 1:
        target_steps += 1
    tb_cap = max(1, min(max_tb, pl.cdiv(M, target_steps)))

    # Prefer an exact divisor of M (every block full); otherwise use a ragged
    # grid (pl.cdiv) so prime/awkward M never collapses to tb = 1.
    tb_div = _largest_divisor_leq(M, tb_cap)
    tb = tb_div if (2 * tb_div >= tb_cap) else tb_cap
    grid_steps = pl.cdiv(M, tb)

    # ---- explicit VMEM limit: double-buffered working set + headroom ----
    working_set = 2 * tb * per_image
    vmem_limit_bytes = int(min(vmem_cap // 2,
                               max(working_set + (4 << 20), 32 << 20)))

    # ---- specs / kernel selection ----
    if end_aligned:
        kernel = _copy_kernel
        in_spec = pl.BlockSpec((tb, Ho, Wo), lambda i: (i, 0, 0))
    elif cut == 'end':
        kernel = _cut_end_slice_kernel
        in_spec = pl.BlockSpec((tb, H, W), lambda i: (i, 0, 0))
    else:  # 'both'
        kernel = _cut_both_kernel
        in_spec = pl.BlockSpec((tb, H, W), lambda i: (i, 0, 0))

    out = pl.pallas_call(
        kernel,
        out_shape=jax.ShapeDtypeStruct((M, Ho, Wo), x.dtype),
        grid_spec=pltpu.PrefetchScalarGridSpec(
            num_scalar_prefetch=0,
            grid=(grid_steps,),
            in_specs=[in_spec],
            out_specs=pl.BlockSpec((tb, Ho, Wo), lambda i: (i, 0, 0)),
        ),
        compiler_params=pltpu.CompilerParams(
            dimension_semantics=("parallel",),
            vmem_limit_bytes=vmem_limit_bytes),
    )(xf)

    return out.reshape(N, C, Ho, Wo)


# ----------------------------------- demo -----------------------------------

if __name__ == "__main__":
    key = jax.random.PRNGKey(0)
    x = jax.random.normal(key, (2, 4, 16, 16), dtype=jnp.float32)

    # cut='both'
    y_both = jax.block_until_ready(cut_pallas(x, cut='both'))
    ref_both = x[:, :, 1:-1, 1:-1]
    assert y_both.shape == (2, 4, 14, 14), y_both.shape
    assert jnp.array_equal(y_both, ref_both)

    # cut='end'
    y_end = jax.block_until_ready(cut_pallas(x, cut='end'))
    ref_end = x[:, :, :-1, :-1]
    assert y_end.shape == (2, 4, 15, 15), y_end.shape
    assert jnp.array_equal(y_end, ref_end)

    # Extra coverage: bf16 dtype and a non-power-of-two / prime-ish M = N*C,
    # plus an aligned-'end' shape (Wo = 128, Ho multiple of 16) that takes the
    # cropped-window DMA fast path.
    x2 = jax.random.normal(jax.random.PRNGKey(0), (3, 7, 33, 129),
                           dtype=jnp.bfloat16)
    y2 = jax.block_until_ready(cut_pallas(x2, cut='end'))
    assert jnp.array_equal(y2, x2[:, :, :-1, :-1])
    y3 = jax.block_until_ready(cut_pallas(x2, cut='both'))
    assert jnp.array_equal(y3, x2[:, :, 1:-1, 1:-1])

    print("KERNEL_OK")
</pallas_src>

<mosaic_0001>
module attributes {stable_mosaic.version = 11 : i64} {
  func.func @_cut_both_kernel(%arg0: i32, %arg1: memref<8x16x16xf32, #tpu.memory_space<vmem>>, %arg2: memref<8x14x14xf32, #tpu.memory_space<vmem>>) attributes {dimension_semantics = [#tpu.dimension_semantics<parallel>], iteration_bounds = array<i64: 1>, scalar_prefetch = 0 : i64, scratch_operands = 0 : i64, tpu.core_type = #tpu.core_type<tc>, window_params = [{transform_indices = @transform_0, window_bounds = array<i64: 8, 16, 16>}, {transform_indices = @transform_1, window_bounds = array<i64: 8, 14, 14>}]} {
    %c0 = arith.constant 0 : index
    %c1 = arith.constant 1 : index
    %c1_0 = arith.constant 1 : index
    %0 = vector.load %arg1[%c0, %c1, %c1_0] : memref<8x16x16xf32, #tpu.memory_space<vmem>>, vector<8x14x14xf32>
    %c0_1 = arith.constant 0 : index
    %c0_2 = arith.constant 0 : index
    %c0_3 = arith.constant 0 : index
    %1 = vector.load %arg2[%c0_1, %c0_2, %c0_3] : memref<8x14x14xf32, #tpu.memory_space<vmem>>, vector<8x14x14xf32>
    tpu.vector_store %arg2[%c0_1, %c0_2, %c0_3], %0 {strides = array<i32>} : memref<8x14x14xf32, #tpu.memory_space<vmem>>, vector<8x14x14xf32>,
    return
  }
  func.func @transform_0(%arg0: i32) -> (i32, i32, i32) {
    %c0_i32 = arith.constant 0 : i32
    %c0_i32_0 = arith.constant 0 : i32
    %c0_i32_1 = arith.constant 0 : i32
    return %arg0, %c0_i32, %c0_i32_0 : i32, i32, i32
  }
  func.func @transform_1(%arg0: i32) -> (i32, i32, i32) {
    %c0_i32 = arith.constant 0 : i32
    %c0_i32_0 = arith.constant 0 : i32
    %c0_i32_1 = arith.constant 0 : i32
    return %arg0, %c0_i32, %c0_i32_0 : i32, i32, i32
  }
}

</mosaic_0001>

<llo_original>
// kernel: tpu_custom_call.1
$region0: #{tpu_custom_call.1}
  #allocation0 [shape = 'u32[]', space=smem, size = 0x4, offset = 0x4, fixed_abs, tag = 'smem constant byte address 0x4 - core index']
  #allocation1 [shape = 'u32[144,128]{1,0:T(1,128)}', space=vmem, size = 0x12000, scoped, tag = 'internal scratch']
  %s0 = inlined_call_operand.hbm [shape: f32[8,16,16], index: 0, kind: input, shape index: {}]
  %s1 = inlined_call_operand.vmem [shape: f32[8,14,14], index: 1, kind: output, shape index: {}]
  %s2 = sld [smem:[#allocation0]]
  $region18: #{tpu_custom_call.1} parent=0
    _
  %s4 = ssub.s32 1, %s2
  %s5 = scalar_select 0, %s4, %s2
  $region1: #{tpu_custom_call.1} parent=0
    #allocation2 [shape = 'u8[65536]{0}', space=vmem, size = 0x10000, scoped, tag = 'input window, operand 0, single buffered']
    #allocation3 [shape = 's32[1]{0}', space=sflag, size = 0x4, scoped, tag = 'scoped memory for tpu_custom_call.1']
    %6 = vsyncpa [#allocation3], 0
    // Predicated region
    $region2: #{tpu_custom_call.1} parent=1 // pred_check
      _
    $region3: #{tpu_custom_call.1} parent=1 // pred_check_branch
      %8 = sbr.rel (0) target = $region5
    $region4: #{tpu_custom_call.1} parent=1 // pred_region
      %s10 = ssub.s32 2048, 2048
      %11 = vsyncadd [#allocation3], %s10
      %s12 = sshll.u32 [#allocation2], 4
      %s13 = int_to_ptr.vmem [resolvable:$true] %s12
      %18 = dma.hbm_to_vmem [thread:$0]  %s0, 2048, %s13, [#allocation3], 128, 128, 8
    $region5: #{tpu_custom_call.1} parent=1 // pred_fallthru
      _
    // Predicated region
    $region6: #{tpu_custom_call.1} parent=1 // pred_check
      _
    $region7: #{tpu_custom_call.1} parent=1 // pred_check_branch
      %20 = sbr.rel (0) target = $region9
    $region8: #{tpu_custom_call.1} parent=1 // pred_region
      %21 = dma.done [#allocation3], 2048
    $region9: #{tpu_custom_call.1} parent=1 // pred_fallthru
      _
    %v22 = vld [vmem:[#allocation2 + $0x1] sm:$0xff]
    %v23 = vld [vmem:[#allocation2 + $0x9] sm:$0x3f]
    %v24 = vld [vmem:[#allocation2 + $0x11] sm:$0xff]
    %v25 = vld [vmem:[#allocation2 + $0x19] sm:$0x3f]
    %v26 = vld [vmem:[#allocation2 + $0x21] sm:$0xff]
    %v27 = vld [vmem:[#allocation2 + $0x29] sm:$0x3f]
    %v28 = vld [vmem:[#allocation2 + $0x31] sm:$0xff]
    %v29 = vld [vmem:[#allocation2 + $0x39] sm:$0x3f]
    %v30 = vld [vmem:[#allocation2 + $0x41] sm:$0xff]
    %v31 = vld [vmem:[#allocation2 + $0x49] sm:$0x3f]
    %v32 = vld [vmem:[#allocation2 + $0x51] sm:$0xff]
    %v33 = vld [vmem:[#allocation2 + $0x59] sm:$0x3f]
    %v34 = vld [vmem:[#allocation2 + $0x61] sm:$0xff]
    %v35 = vld [vmem:[#allocation2 + $0x69] sm:$0x3f]
    %v36 = vld [vmem:[#allocation2 + $0x71] sm:$0xff]
    %v37 = vld [vmem:[#allocation2 + $0x79] sm:$0x3f]
    %54 = vrot.lane.b32.xlu0 %v22, 127
    %v55 = vpop.permute.xlu0 %54
    %56 = vrot.lane.b32.xlu0 %v23, 127
    %v57 = vpop.permute.xlu0 %56
    %58 = vrot.lane.b32.xlu0 %v24, 127
    %v59 = vpop.permute.xlu0 %58
    %60 = vrot.lane.b32.xlu0 %v25, 127
    %v61 = vpop.permute.xlu0 %60
    %62 = vrot.lane.b32.xlu0 %v26, 127
    %v63 = vpop.permute.xlu0 %62
    %64 = vrot.lane.b32.xlu0 %v27, 127
    %v65 = vpop.permute.xlu0 %64
    %66 = vrot.lane.b32.xlu0 %v28, 127
    %v67 = vpop.permute.xlu0 %66
    %68 = vrot.lane.b32.xlu0 %v29, 127
    %v69 = vpop.permute.xlu0 %68
    %70 = vrot.lane.b32.xlu0 %v30, 127
    %v71 = vpop.permute.xlu0 %70
    %72 = vrot.lane.b32.xlu0 %v31, 127
    %v73 = vpop.permute.xlu0 %72
    %74 = vrot.lane.b32.xlu0 %v32, 127
    %v75 = vpop.permute.xlu0 %74
    %76 = vrot.lane.b32.xlu0 %v33, 127
    %v77 = vpop.permute.xlu0 %76
    %78 = vrot.lane.b32.xlu0 %v34, 127
    %v79 = vpop.permute.xlu0 %78
    %80 = vrot.lane.b32.xlu0 %v35, 127
    %v81 = vpop.permute.xlu0 %80
    %82 = vrot.lane.b32.xlu0 %v36, 127
    %v83 = vpop.permute.xlu0 %82
    %84 = vrot.lane.b32.xlu0 %v37, 127
    %v85 = vpop.permute.xlu0 %84
    %vm102 = vcmask 113664
    %103 = vst.msk [vmem:[%s1] sm:$0xff] %vm102, %v55
    %vm104 = vcmask 111616
    %105 = vst.msk [vmem:[%s1 + $0x8] sm:$0x3f] %vm104, %v57
    %106 = vst.msk [vmem:[%s1 + $0x10] sm:$0xff] %vm102, %v59
    %107 = vst.msk [vmem:[%s1 + $0x18] sm:$0x3f] %vm104, %v61
    %108 = vst.msk [vmem:[%s1 + $0x20] sm:$0xff] %vm102, %v63
    %109 = vst.msk [vmem:[%s1 + $0x28] sm:$0x3f] %vm104, %v65
    %110 = vst.msk [vmem:[%s1 + $0x30] sm:$0xff] %vm102, %v67
    %111 = vst.msk [vmem:[%s1 + $0x38] sm:$0x3f] %vm104, %v69
    %112 = vst.msk [vmem:[%s1 + $0x40] sm:$0xff] %vm102, %v71
    %113 = vst.msk [vmem:[%s1 + $0x48] sm:$0x3f] %vm104, %v73
    %114 = vst.msk [vmem:[%s1 + $0x50] sm:$0xff] %vm102, %v75
    %115 = vst.msk [vmem:[%s1 + $0x58] sm:$0x3f] %vm104, %v77
    %116 = vst.msk [vmem:[%s1 + $0x60] sm:$0xff] %vm102, %v79
    %117 = vst.msk [vmem:[%s1 + $0x68] sm:$0x3f] %vm104, %v81
    %118 = vst.msk [vmem:[%s1 + $0x70] sm:$0xff] %vm102, %v83
    %119 = vst.msk [vmem:[%s1 + $0x78] sm:$0x3f] %vm104, %v85
    // Predicated region
    $region10: #{tpu_custom_call.1} parent=1 // pred_check
      _
    $region11: #{tpu_custom_call.1} parent=1 // pred_check_branch
      %121 = sbr.rel (0) target = $region13
    $region12: #{tpu_custom_call.1} parent=1 // pred_region
      _
    $region13: #{tpu_custom_call.1} parent=1 // pred_fallthru
      _
    // Predicated region
    $region14: #{tpu_custom_call.1} parent=1 // pred_check
      _
    $region15: #{tpu_custom_call.1} parent=1 // pred_check_branch
      %123 = sbr.rel (0) target = $region17
    $region16: #{tpu_custom_call.1} parent=1 // pred_region
      _
    $region17: #{tpu_custom_call.1} parent=1 // pred_fallthru
      _
    %124 = vsyncpa [#allocation3], 1

</llo_original>
